<compile_context>
chip_gen: v7x
topology: tpu7x:2x2x1
jax: 0.10.0
libtpu: 0.0.40
codegen_flags: <defaults>
</compile_context>

<pallas_src>
import functools
import math

import jax
import jax.numpy as jnp
from jax.experimental import pallas as pl
from jax.experimental.pallas import tpu as pltpu

STATE_DIM = 24     # BipedalWalker-v3 observation_space.shape[0]
ACTION_DIM = 4     # BipedalWalker-v3 action_space.shape[0]
ACTION_STD = 0.5

_LOG_2PI = math.log(2.0 * math.pi)
_CHUNK_ROWS = 1024            # rows per in-kernel compute chunk (bounds VMEM temps)


def _round_up(x, m):
    return ((x + m - 1) // m) * m


def _a2c_kernel(state_ref, action_ref, w1_ref, b1_ref, w2_ref, b2_ref,
                w3_ref, b3_ref, nhiv_ref, const_ref, out_ref, *, a_dim, chunk):
    """Fused actor+critic forward + diagonal-Gaussian log_prob for one batch tile.

    The (tile_b, .) block is processed in `chunk`-row sub-chunks so the large
    HBM tile (DMA amortization) is decoupled from the VMEM cost of the
    (chunk, 128) / (chunk, 64) intermediates.
    """
    cdt = w1_ref.dtype                       # compute dtype (f32, or bf16 on v6e/v7x)
    a_pad = out_ref.shape[1]
    n_chunks = out_ref.shape[0] // chunk     # static: tile_b is a multiple of chunk
    logp_const = const_ref[0, 0]             # SMEM scalar: -0.5*(A*log2pi + sum(log var))

    def body(c, carry):
        r = pl.multiple_of(c * chunk, chunk)
        x = state_ref[pl.ds(r, chunk), :].astype(cdt)                 # (chunk, S)

        # layer 1 (actor || critic lane-packed)      -> (chunk, 128)
        z1 = jnp.dot(x, w1_ref[...], preferred_element_type=jnp.float32) + b1_ref[...]
        h1 = jnp.tanh(z1.astype(cdt))
        # layer 2 (block-diagonal)                   -> (chunk, 64)
        z2 = jnp.dot(h1, w2_ref[...], preferred_element_type=jnp.float32) + b2_ref[...]
        h2 = jnp.tanh(z2.astype(cdt))
        # layer 3 (block-diagonal, zero-padded)      -> (chunk, a_pad)
        #   lanes 0..A-1: actor pre-tanh, lane A: critic state value, rest 0.
        z3 = jnp.dot(h2, w3_ref[...], preferred_element_type=jnp.float32) + b3_ref[...]

        # Gaussian log-prob tail stays in f32.
        mu = jnp.tanh(z3[:, :a_dim])                                  # (chunk, A)
        diff = action_ref[pl.ds(r, chunk), :] - mu                    # (chunk, A) f32
        logp = (jnp.sum(diff * diff * nhiv_ref[...], axis=-1, keepdims=True)
                + logp_const)                                         # (chunk, 1)

        # merged output block: lane A = state_value, lane A+1 = action_log_prob.
        lane = jax.lax.broadcasted_iota(jnp.int32, (chunk, a_pad), 1)
        out_ref[pl.ds(r, chunk), :] = jnp.where(
            lane == a_dim, z3, jnp.where(lane == a_dim + 1, logp, 0.0))
        return carry

    jax.lax.fori_loop(0, n_chunks, body, 0, unroll=True)


@functools.partial(jax.jit,
                   static_argnames=("tile_b", "compute_dtype", "vmem_limit_bytes"))
def a2c_evaluate(state, action, params, *, tile_b=8192,
                 compute_dtype=jnp.float32, vmem_limit_bytes=None):
    """Pallas A2CNet.evaluate(): (state_value[B], action_log_probs[B], dist_entropy[B])."""
    f32 = jnp.float32
    cdt = jnp.dtype(compute_dtype)
    B, S = state.shape
    A = action.shape[1]
    a_pad = _round_up(A + 2, 8)              # actor lanes + value lane + logp lane -> 8

    aw1, ab1 = params["aw1"], params["ab1"]  # (S,64), (1,64)
    aw2, ab2 = params["aw2"], params["ab2"]  # (64,32), (1,32)
    aw3, ab3 = params["aw3"], params["ab3"]  # (32,A), (1,A)
    cw1, cb1 = params["cw1"], params["cb1"]
    cw2, cb2 = params["cw2"], params["cb2"]
    cw3, cb3 = params["cw3"], params["cb3"]  # (32,1), (1,1)
    var = params["action_var"].reshape(1, A).astype(f32)

    h1a, h2a = aw2.shape
    h1c, h2c = cw2.shape
    H1, H2 = h1a + h1c, h2a + h2c            # 128, 64

    # ---- fused / block-diagonal weights (actor lanes first, then critic) ----
    w1 = jnp.concatenate([aw1, cw1], axis=1).astype(cdt)                      # (S, H1)
    b1 = jnp.concatenate([ab1, cb1], axis=1).astype(f32)                      # (1, H1)
    w2 = (jnp.zeros((H1, H2), f32).at[:h1a, :h2a].set(aw2)
          .at[h1a:, h2a:].set(cw2)).astype(cdt)                               # (H1, H2)
    b2 = jnp.concatenate([ab2, cb2], axis=1).astype(f32)                      # (1, H2)
    w3 = (jnp.zeros((H2, a_pad), f32).at[:h2a, :A].set(aw3)
          .at[h2a:, A].set(cw3[:, 0])).astype(cdt)                            # (H2, 8)
    b3 = (jnp.zeros((1, a_pad), f32).at[:, :A].set(ab3)
          .at[:, A].set(cb3[:, 0]))                                           # (1, 8)

    # ---- Gaussian constants (parameter-only; no in-kernel log / divide) ----
    nhiv = -0.5 / var                                                         # (1, A)
    sum_log_var = jnp.sum(jnp.log(var))
    logp_const = jnp.reshape(-0.5 * (A * _LOG_2PI + sum_log_var), (1, 1)).astype(f32)
    entropy = 0.5 * A * (1.0 + _LOG_2PI) + 0.5 * sum_log_var                  # scalar

    # ---- tiling: big HBM tiles, chunked compute, >=2 grid steps for megacore ----
    chunk = min(_CHUNK_ROWS, _round_up(B, 8))
    b_ceil = _round_up(B, chunk)
    tb = min(_round_up(max(tile_b, chunk), chunk), b_ceil)
    if b_ceil // chunk >= 2:                 # batch splittable -> use both TCs on v7x
        tb = min(tb, _round_up(pl.cdiv(b_ceil, 2), chunk))
    grid = (pl.cdiv(B, tb),)                 # ragged last block; no padded input copies

    # bf16 state halves the dominant HBM->VMEM stream on v6e/v7x; action stays f32.
    state_in = state if state.dtype == cdt else state.astype(cdt)
    action_in = action if action.dtype == f32 else action.astype(f32)

    row_spec = lambda d: pl.BlockSpec((tb, d), lambda i: (i, 0))
    rep_spec = lambda a: pl.BlockSpec(a.shape, lambda i: (0, 0))   # VMEM-resident params

    cp = dict(dimension_semantics=("parallel",))
    if vmem_limit_bytes is not None:
        cp["vmem_limit_bytes"] = int(vmem_limit_bytes)

    out = pl.pallas_call(
        functools.partial(_a2c_kernel, a_dim=A, chunk=chunk),
        out_shape=jax.ShapeDtypeStruct((B, a_pad), f32),
        grid=grid,
        in_specs=[
            row_spec(S), row_spec(A),
            rep_spec(w1), rep_spec(b1), rep_spec(w2), rep_spec(b2),
            rep_spec(w3), rep_spec(b3), rep_spec(nhiv),
            pl.BlockSpec(memory_space=pltpu.MemorySpace.SMEM),     # logp_const scalar
        ],
        out_specs=row_spec(a_pad),
        compiler_params=pltpu.CompilerParams(**cp),
    )(state_in, action_in, w1, b1, w2, b2, w3, b3, nhiv, logp_const)

    value = out[:, A]
    logp = out[:, A + 1]
    ent = jnp.broadcast_to(entropy, (B,))
    return value, logp, ent


def init_params(key, state_dim=STATE_DIM, action_dim=ACTION_DIM,
                action_std=ACTION_STD):
    """Deterministic init mimicking PyTorch nn.Linear defaults (U[-1/sqrt(fan_in), +])."""
    def linear(k, fan_in, fan_out):
        kw, kb = jax.random.split(k)
        bound = 1.0 / math.sqrt(fan_in)
        # stored already transposed: (in, out); bias as (1, out)
        w = jax.random.uniform(kw, (fan_in, fan_out), jnp.float32, -bound, bound)
        b = jax.random.uniform(kb, (1, fan_out), jnp.float32, -bound, bound)
        return w, b

    keys = jax.random.split(key, 6)
    aw1, ab1 = linear(keys[0], state_dim, 64)
    aw2, ab2 = linear(keys[1], 64, 32)
    aw3, ab3 = linear(keys[2], 32, action_dim)
    cw1, cb1 = linear(keys[3], state_dim, 64)
    cw2, cb2 = linear(keys[4], 64, 32)
    cw3, cb3 = linear(keys[5], 32, 1)
    action_var = jnp.full((1, action_dim), action_std * action_std, jnp.float32)
    return dict(aw1=aw1, ab1=ab1, aw2=aw2, ab2=ab2, aw3=aw3, ab3=ab3,
                cw1=cw1, cb1=cb1, cw2=cw2, cb2=cb2, cw3=cw3, cb3=cb3,
                action_var=action_var)


def _reference(state, action, p):
    """Pure-JAX reference of the same computation (for sanity checks)."""
    h = jnp.tanh(state @ p["aw1"] + p["ab1"])
    h = jnp.tanh(h @ p["aw2"] + p["ab2"])
    mu = jnp.tanh(h @ p["aw3"] + p["ab3"])
    c = jnp.tanh(state @ p["cw1"] + p["cb1"])
    c = jnp.tanh(c @ p["cw2"] + p["cb2"])
    v = c @ p["cw3"] + p["cb3"]
    var = p["action_var"].reshape(1, -1)
    k = action.shape[-1]
    diff = action - mu
    slv = jnp.sum(jnp.log(var))
    logp = -0.5 * (jnp.sum(diff * diff / var, axis=-1)
                   + k * math.log(2 * math.pi)) - 0.5 * slv
    ent = jnp.broadcast_to(0.5 * k * (1 + math.log(2 * math.pi)) + 0.5 * slv,
                           logp.shape)
    return v[:, 0], logp, ent


def _check(got, ref, atol, rtol):
    for g, r in zip(got, ref):
        assert jnp.allclose(g, r, atol=atol, rtol=rtol), (g, r)


if __name__ == "__main__":
    key = jax.random.PRNGKey(0)
    kp, ks, ka, ks2, ka2 = jax.random.split(key, 5)
    params = init_params(kp)

    kind = jax.devices()[0].device_kind.lower()
    old_gen = any(t in kind for t in ("v2", "v3", "v4", "v5"))
    # bf16 matmul/tanh chain is a DMA + EUP win on v6e/v7x; v5e and older stay f32.
    best_dtype = jnp.float32 if old_gen else jnp.bfloat16

    # small batch: single grid step, block bigger than the batch (masked tail rows)
    B = 8
    state = jax.random.normal(ks, (B, STATE_DIM), jnp.float32)
    action = jax.random.normal(ka, (B, ACTION_DIM), jnp.float32)
    out = a2c_evaluate(state, action, params)
    jax.block_until_ready(out)
    _check(out, _reference(state, action, params), atol=1e-4, rtol=1e-4)

    # larger batch: multi-step grid with a ragged final block (no wrapper padding), f32
    B2 = 2500
    state2 = jax.random.normal(ks2, (B2, STATE_DIM), jnp.float32)
    action2 = jax.random.normal(ka2, (B2, ACTION_DIM), jnp.float32)
    ref2 = _reference(state2, action2, params)
    out2 = a2c_evaluate(state2, action2, params, tile_b=1024)
    jax.block_until_ready(out2)
    _check(out2, ref2, atol=1e-4, rtol=1e-4)

    # default config: large tiles, >=2 grid steps (v7x megacore), bf16 on v6e/v7x
    out3 = a2c_evaluate(state2, action2, params, compute_dtype=best_dtype)
    jax.block_until_ready(out3)
    if best_dtype == jnp.float32:
        _check(out3, ref2, atol=1e-4, rtol=1e-4)
    else:
        _check(out3, ref2, atol=1e-1, rtol=1e-1)

    print("KERNEL_OK")
</pallas_src>

<mosaic_0001>
module attributes {stable_mosaic.version = 11 : i64} {
  func.func @_a2c_kernel(%arg0: i32, %arg1: memref<8x24xf32, #tpu.memory_space<vmem>>, %arg2: memref<8x4xf32, #tpu.memory_space<vmem>>, %arg3: memref<24x128xf32, #tpu.memory_space<vmem>>, %arg4: memref<1x128xf32, #tpu.memory_space<vmem>>, %arg5: memref<128x64xf32, #tpu.memory_space<vmem>>, %arg6: memref<1x64xf32, #tpu.memory_space<vmem>>, %arg7: memref<64x8xf32, #tpu.memory_space<vmem>>, %arg8: memref<1x8xf32, #tpu.memory_space<vmem>>, %arg9: memref<1x4xf32, #tpu.memory_space<vmem>>, %arg10: memref<1x1xf32, #tpu.memory_space<smem>>, %arg11: memref<8x8xf32, #tpu.memory_space<vmem>>) attributes {dimension_semantics = [#tpu.dimension_semantics<parallel>], iteration_bounds = array<i64: 1>, scalar_prefetch = 0 : i64, scratch_operands = 0 : i64, tpu.core_type = #tpu.core_type<tc>, window_params = [{transform_indices = @transform_0, window_bounds = array<i64: 8, 24>}, {transform_indices = @transform_1, window_bounds = array<i64: 8, 4>}, {pipeline_mode = #tpu.pipeline_mode<synchronous>, transform_indices = @transform_2, window_bounds = array<i64: 24, 128>}, {pipeline_mode = #tpu.pipeline_mode<synchronous>, transform_indices = @transform_3, window_bounds = array<i64: 1, 128>}, {pipeline_mode = #tpu.pipeline_mode<synchronous>, transform_indices = @transform_4, window_bounds = array<i64: 128, 64>}, {pipeline_mode = #tpu.pipeline_mode<synchronous>, transform_indices = @transform_5, window_bounds = array<i64: 1, 64>}, {pipeline_mode = #tpu.pipeline_mode<synchronous>, transform_indices = @transform_6, window_bounds = array<i64: 64, 8>}, {pipeline_mode = #tpu.pipeline_mode<synchronous>, transform_indices = @transform_7, window_bounds = array<i64: 1, 8>}, {pipeline_mode = #tpu.pipeline_mode<synchronous>, transform_indices = @transform_8, window_bounds = array<i64: 1, 4>}, {transform_indices = @transform_9, window_bounds = array<i64: 1, 1>}, {transform_indices = @transform_10, window_bounds = array<i64: 8, 8>}]} {
    %c0 = arith.constant 0 : index
    %c0_0 = arith.constant 0 : index
    %0 = memref.load %arg10[%c0, %c0_0] : memref<1x1xf32, #tpu.memory_space<smem>>
    %c0_i32 = arith.constant 0 : i32
    %c8_i32 = arith.constant 8 : i32
    %1 = arith.muli %c0_i32, %c8_i32 : i32
    %2 = tpu.assume_multiple %1, 8 : i32
    %3 = arith.index_cast %2 : i32 to index
    %c0_1 = arith.constant 0 : index
    %4 = vector.load %arg1[%3, %c0_1] : memref<8x24xf32, #tpu.memory_space<vmem>>, vector<8x24xf32>
    %c0_2 = arith.constant 0 : index
    %c0_3 = arith.constant 0 : index
    %5 = vector.load %arg3[%c0_2, %c0_3] : memref<24x128xf32, #tpu.memory_space<vmem>>, vector<24x128xf32>
    %cst = arith.constant dense<0.000000e+00> : vector<8x128xf32>
    %6 = tpu.matmul %4, %5, %cst {dimension_numbers = #tpu.dot_dimension_numbers<[1], [0], [0], [1], [0, 0, 1, 1], [], []>} : vector<8x24xf32>, vector<24x128xf32>, vector<8x128xf32> -> vector<8x128xf32>
    %c0_4 = arith.constant 0 : index
    %c0_5 = arith.constant 0 : index
    %7 = vector.load %arg4[%c0_4, %c0_5] : memref<1x128xf32, #tpu.memory_space<vmem>>, vector<1x128xf32>
    %8 = vector.broadcast %7 : vector<1x128xf32> to vector<8x128xf32>
    %9 = arith.addf %6, %8 : vector<8x128xf32>
    %10 = math.tanh %9 : vector<8x128xf32>
    %c0_6 = arith.constant 0 : index
    %c0_7 = arith.constant 0 : index
    %11 = vector.load %arg5[%c0_6, %c0_7] : memref<128x64xf32, #tpu.memory_space<vmem>>, vector<128x64xf32>
    %cst_8 = arith.constant dense<0.000000e+00> : vector<8x64xf32>
    %12 = tpu.matmul %10, %11, %cst_8 {dimension_numbers = #tpu.dot_dimension_numbers<[1], [0], [0], [1], [0, 0, 1, 1], [], []>} : vector<8x128xf32>, vector<128x64xf32>, vector<8x64xf32> -> vector<8x64xf32>
    %c0_9 = arith.constant 0 : index
    %c0_10 = arith.constant 0 : index
    %13 = vector.load %arg6[%c0_9, %c0_10] : memref<1x64xf32, #tpu.memory_space<vmem>>, vector<1x64xf32>
    %14 = vector.broadcast %13 : vector<1x64xf32> to vector<8x64xf32>
    %15 = arith.addf %12, %14 : vector<8x64xf32>
    %16 = math.tanh %15 : vector<8x64xf32>
    %c0_11 = arith.constant 0 : index
    %c0_12 = arith.constant 0 : index
    %17 = vector.load %arg7[%c0_11, %c0_12] : memref<64x8xf32, #tpu.memory_space<vmem>>, vector<64x8xf32>
    %cst_13 = arith.constant dense<0.000000e+00> : vector<8x8xf32>
    %18 = tpu.matmul %16, %17, %cst_13 {dimension_numbers = #tpu.dot_dimension_numbers<[1], [0], [0], [1], [0, 0, 1, 1], [], []>} : vector<8x64xf32>, vector<64x8xf32>, vector<8x8xf32> -> vector<8x8xf32>
    %c0_14 = arith.constant 0 : index
    %c0_15 = arith.constant 0 : index
    %19 = vector.load %arg8[%c0_14, %c0_15] : memref<1x8xf32, #tpu.memory_space<vmem>>, vector<1x8xf32>
    %20 = vector.broadcast %19 : vector<1x8xf32> to vector<8x8xf32>
    %21 = arith.addf %18, %20 : vector<8x8xf32>
    %22 = vector.extract_strided_slice %21 {offsets = [0, 0], sizes = [8, 4], strides = [1, 1]} : vector<8x8xf32> to vector<8x4xf32>
    %23 = math.tanh %22 : vector<8x4xf32>
    %24 = arith.index_cast %2 : i32 to index
    %c0_16 = arith.constant 0 : index
    %25 = vector.load %arg2[%24, %c0_16] : memref<8x4xf32, #tpu.memory_space<vmem>>, vector<8x4xf32>
    %26 = arith.subf %25, %23 : vector<8x4xf32>
    %27 = arith.mulf %26, %26 : vector<8x4xf32>
    %c0_17 = arith.constant 0 : index
    %c0_18 = arith.constant 0 : index
    %28 = vector.load %arg9[%c0_17, %c0_18] : memref<1x4xf32, #tpu.memory_space<vmem>>, vector<1x4xf32>
    %29 = vector.broadcast %28 : vector<1x4xf32> to vector<8x4xf32>
    %30 = arith.mulf %27, %29 : vector<8x4xf32>
    %cst_19 = arith.constant dense<0.000000e+00> : vector<8xf32>
    %31 = vector.multi_reduction <add>, %30, %cst_19 [1] : vector<8x4xf32> to vector<8xf32>
    %32 = vector.shape_cast %31 : vector<8xf32> to vector<8x1xf32>
    %33 = vector.broadcast %0 : f32 to vector<8x1xf32>
    %34 = arith.addf %32, %33 : vector<8x1xf32>
    %35 = tpu.iota {dimensions = array<i32: 1>} : vector<8x8xi32>
    %c4_i32 = arith.constant 4 : i32
    %36 = vector.broadcast %c4_i32 : i32 to vector<8x8xi32>
    %37 = arith.cmpi eq, %35, %36 : vector<8x8xi32>
    %c5_i32 = arith.constant 5 : i32
    %38 = vector.broadcast %c5_i32 : i32 to vector<8x8xi32>
    %39 = arith.cmpi eq, %35, %38 : vector<8x8xi32>
    %cst_20 = arith.constant 0.000000e+00 : f32
    %40 = vector.shape_cast %34 : vector<8x1xf32> to vector<8x1xf32>
    %41 = vector.broadcast %40 : vector<8x1xf32> to vector<8x8xf32>
    %42 = vector.broadcast %cst_20 : f32 to vector<8x8xf32>
    %43 = arith.select %39, %41, %42 : vector<8x8xi1>, vector<8x8xf32>
    %44 = arith.select %37, %21, %43 : vector<8x8xi1>, vector<8x8xf32>
    %45 = arith.index_cast %2 : i32 to index
    %c0_21 = arith.constant 0 : index
    %46 = vector.load %arg11[%45, %c0_21] : memref<8x8xf32, #tpu.memory_space<vmem>>, vector<8x8xf32>
    tpu.vector_store %arg11[%45, %c0_21], %44 {strides = array<i32>} : memref<8x8xf32, #tpu.memory_space<vmem>>, vector<8x8xf32>,
    %c1_i32 = arith.constant 1 : i32
    return
  }
  func.func @transform_0(%arg0: i32) -> (i32, i32) {
    %c0_i32 = arith.constant 0 : i32
    %c0_i32_0 = arith.constant 0 : i32
    return %arg0, %c0_i32 : i32, i32
  }
  func.func @transform_1(%arg0: i32) -> (i32, i32) {
    %c0_i32 = arith.constant 0 : i32
    %c0_i32_0 = arith.constant 0 : i32
    return %arg0, %c0_i32 : i32, i32
  }
  func.func @transform_2(%arg0: i32) -> (i32, i32) {
    %c0_i32 = arith.constant 0 : i32
    %c0_i32_0 = arith.constant 0 : i32
    %c0_i32_1 = arith.constant 0 : i32
    return %c0_i32, %c0_i32_0 : i32, i32
  }
  func.func @transform_3(%arg0: i32) -> (i32, i32) {
    %c0_i32 = arith.constant 0 : i32
    %c0_i32_0 = arith.constant 0 : i32
    %c0_i32_1 = arith.constant 0 : i32
    return %c0_i32, %c0_i32_0 : i32, i32
  }
  func.func @transform_4(%arg0: i32) -> (i32, i32) {
    %c0_i32 = arith.constant 0 : i32
    %c0_i32_0 = arith.constant 0 : i32
    %c0_i32_1 = arith.constant 0 : i32
    return %c0_i32, %c0_i32_0 : i32, i32
  }
  func.func @transform_5(%arg0: i32) -> (i32, i32) {
    %c0_i32 = arith.constant 0 : i32
    %c0_i32_0 = arith.constant 0 : i32
    %c0_i32_1 = arith.constant 0 : i32
    return %c0_i32, %c0_i32_0 : i32, i32
  }
  func.func @transform_6(%arg0: i32) -> (i32, i32) {
    %c0_i32 = arith.constant 0 : i32
    %c0_i32_0 = arith.constant 0 : i32
    %c0_i32_1 = arith.constant 0 : i32
    return %c0_i32, %c0_i32_0 : i32, i32
  }
  func.func @transform_7(%arg0: i32) -> (i32, i32) {
    %c0_i32 = arith.constant 0 : i32
    %c0_i32_0 = arith.constant 0 : i32
    %c0_i32_1 = arith.constant 0 : i32
    return %c0_i32, %c0_i32_0 : i32, i32
  }
  func.func @transform_8(%arg0: i32) -> (i32, i32) {
    %c0_i32 = arith.constant 0 : i32
    %c0_i32_0 = arith.constant 0 : i32
    %c0_i32_1 = arith.constant 0 : i32
    return %c0_i32, %c0_i32_0 : i32, i32
  }
  func.func @transform_9(%arg0: i32) -> (i32, i32) {
    %c0_i32 = arith.constant 0 : i32
    %c0_i32_0 = arith.constant 0 : i32
    %c0_i32_1 = arith.constant 0 : i32
    return %c0_i32, %c0_i32_0 : i32, i32
  }
  func.func @transform_10(%arg0: i32) -> (i32, i32) {
    %c0_i32 = arith.constant 0 : i32
    %c0_i32_0 = arith.constant 0 : i32
    return %arg0, %c0_i32 : i32, i32
  }
}

</mosaic_0001>

<llo_original>
// kernel: a2c_evaluate.1
$region0: #{a2c_evaluate.1}
  #allocation0 [shape = 'u32[]', space=smem, size = 0x4, offset = 0x4, fixed_abs, tag = 'smem constant byte address 0x4 - core index']
  #allocation1 [shape = 'u32[144,128]{1,0:T(1,128)}', space=vmem, size = 0x12000, scoped, tag = 'internal scratch']
  #allocation2 [shape = 'f32[1,1]{1,0:T(1,128)S(6)}', space=smem, size = 0x200, scoped, tag = 'scoped memory for a2c_evaluate.1']
  %s0 = inlined_call_operand.vmem [shape: f32[8,24], index: 0, kind: input, shape index: {}]
  %s1 = inlined_call_operand.vmem [shape: f32[8,4], index: 1, kind: input, shape index: {}]
  %s2 = inlined_call_operand.vmem [shape: f32[24,128], index: 2, kind: input, shape index: {}]
  %s3 = inlined_call_operand.vmem [shape: f32[1,128], index: 3, kind: input, shape index: {}]
  %s4 = inlined_call_operand.vmem [shape: f32[128,64], index: 4, kind: input, shape index: {}]
  %s5 = inlined_call_operand.vmem [shape: f32[1,64], index: 5, kind: input, shape index: {}]
  %s6 = inlined_call_operand.vmem [shape: f32[64,8], index: 6, kind: input, shape index: {}]
  %s7 = inlined_call_operand.vmem [shape: f32[1,8], index: 7, kind: input, shape index: {}]
  %s8 = inlined_call_operand.vmem [shape: f32[1,4], index: 8, kind: input, shape index: {}]
  %s9 = inlined_call_operand.<no memory space> [shape: f32[1,1], index: 9, kind: input, shape index: {}]
  %s10 = inlined_call_operand.vmem [shape: f32[8,8], index: 10, kind: output, shape index: {}]
  %s11 = sld [smem:[#allocation0]]
  $region50: #{a2c_evaluate.1} parent=0
    _
  %s13 = ssub.s32 1, %s11
  %s14 = scalar_select 0, %s13, %s11
  %15 = sst [smem:[#allocation2]] %s9
  // Predicated region
  $region2: #{a2c_evaluate.1} parent=0 // pred_check
    _
  $region3: #{a2c_evaluate.1} parent=0 // pred_check_branch
    %17 = sbr.rel (0) target = $region5
  $region4: #{a2c_evaluate.1} parent=0 // pred_region
    _
  $region5: #{a2c_evaluate.1} parent=0 // pred_fallthru
    _
  // Predicated region
  $region6: #{a2c_evaluate.1} parent=0 // pred_check
    _
  $region7: #{a2c_evaluate.1} parent=0 // pred_check_branch
    %19 = sbr.rel (0) target = $region9
  $region8: #{a2c_evaluate.1} parent=0 // pred_region
    _
  $region9: #{a2c_evaluate.1} parent=0 // pred_fallthru
    _
  // Predicated region
  $region10: #{a2c_evaluate.1} parent=0 // pred_check
    _
  $region11: #{a2c_evaluate.1} parent=0 // pred_check_branch
    %21 = sbr.rel (0) target = $region13
  $region12: #{a2c_evaluate.1} parent=0 // pred_region
    _
  $region13: #{a2c_evaluate.1} parent=0 // pred_fallthru
    _
  // Predicated region
  $region14: #{a2c_evaluate.1} parent=0 // pred_check
    _
  $region15: #{a2c_evaluate.1} parent=0 // pred_check_branch
    %23 = sbr.rel (0) target = $region17
  $region16: #{a2c_evaluate.1} parent=0 // pred_region
    _
  $region17: #{a2c_evaluate.1} parent=0 // pred_fallthru
    _
  // Predicated region
  $region18: #{a2c_evaluate.1} parent=0 // pred_check
    _
  $region19: #{a2c_evaluate.1} parent=0 // pred_check_branch
    %25 = sbr.rel (0) target = $region21
  $region20: #{a2c_evaluate.1} parent=0 // pred_region
    _
  $region21: #{a2c_evaluate.1} parent=0 // pred_fallthru
    _
  // Predicated region
  $region22: #{a2c_evaluate.1} parent=0 // pred_check
    _
  $region23: #{a2c_evaluate.1} parent=0 // pred_check_branch
    %27 = sbr.rel (0) target = $region25
  $region24: #{a2c_evaluate.1} parent=0 // pred_region
    _
  $region25: #{a2c_evaluate.1} parent=0 // pred_fallthru
    _
  // Predicated region
  $region26: #{a2c_evaluate.1} parent=0 // pred_check
    _
  $region27: #{a2c_evaluate.1} parent=0 // pred_check_branch
    %29 = sbr.rel (0) target = $region29
  $region28: #{a2c_evaluate.1} parent=0 // pred_region
    _
  $region29: #{a2c_evaluate.1} parent=0 // pred_fallthru
    _
  // Predicated region
  $region30: #{a2c_evaluate.1} parent=0 // pred_check
    _
  $region31: #{a2c_evaluate.1} parent=0 // pred_check_branch
    %31 = sbr.rel (0) target = $region33
  $region32: #{a2c_evaluate.1} parent=0 // pred_region
    _
  $region33: #{a2c_evaluate.1} parent=0 // pred_fallthru
    _
  // Predicated region
  $region34: #{a2c_evaluate.1} parent=0 // pred_check
    _
  $region35: #{a2c_evaluate.1} parent=0 // pred_check_branch
    %33 = sbr.rel (0) target = $region37
  $region36: #{a2c_evaluate.1} parent=0 // pred_region
    _
  $region37: #{a2c_evaluate.1} parent=0 // pred_fallthru
    _
  // Predicated region
  $region38: #{a2c_evaluate.1} parent=0 // pred_check
    _
  $region39: #{a2c_evaluate.1} parent=0 // pred_check_branch
    %35 = sbr.rel (0) target = $region41
  $region40: #{a2c_evaluate.1} parent=0 // pred_region
    _
  $region41: #{a2c_evaluate.1} parent=0 // pred_fallthru
    _
  %s36 = sld [smem:[#allocation2]]
  %v37 = vld [vmem:[%s0] sm:$0xff]
  %v38 = vld [vmem:[%s2] sm:$0xff]
  %v39 = vld [vmem:[%s2 + $0x8] sm:$0xff]
  %v40 = vld [vmem:[%s2 + $0x10] sm:$0xff]
  %v41 = vld [vmem:[%s3] sm:$0x1]
  %v43 = vlaneseq
  %v44 = vshrl.u32 %v43, 7
  %v45 = vsub.s32 0, %v44
  %v46 = vrot.slane %v41, %v45
  %vm48 = vcmask 195584
  %v50 = vsel %vm48, %v37, 0
  %52 = vmatprep.subr.mxu0 0.0
  %53 = vmatpush1.msra.mxu0 %v38
  %54 = vmatprep.subr.mxu0 0.0
  %55 = vmatpush1.msra.mxu0 %v39
  %56 = vmatprep.subr.mxu0 0.0
  %57 = vmatpush1.msra.mxu0 %v40
  %58 = vmatprep.subr.mxu0 0.0
  %59 = vmatpush1.msra.mxu0 0.0
  %60 = vmatprep.subr.mxu0 0.0
  %61 = vmatpush1.msra.mxu0 0.0
  %62 = vmatprep.subr.mxu0 0.0
  %63 = vmatpush1.msra.mxu0 0.0
  %64 = vmatprep.subr.mxu0 0.0
  %65 = vmatpush1.msra.mxu0 0.0
  %66 = vmatprep.subr.mxu0 0.0
  %67 = vmatpush1.msra.mxu0 0.0
  %68 = vmatprep.subr.mxu0 0.0
  %69 = vmatpush1.msra.mxu0 0.0
  %70 = vmatprep.subr.mxu0 0.0
  %71 = vmatpush1.msra.mxu0 0.0
  %72 = vmatprep.subr.mxu0 0.0
  %73 = vmatpush1.msra.mxu0 0.0
  %74 = vmatprep.subr.mxu0 0.0
  %75 = vmatpush1.msra.mxu0 0.0
  %76 = vmatprep.subr.mxu0 0.0
  %77 = vmatpush1.msra.mxu0 0.0
  %78 = vmatprep.subr.mxu0 0.0
  %79 = vmatpush1.msra.mxu0 0.0
  %80 = vmatprep.subr.mxu0 0.0
  %81 = vmatpush1.msra.mxu0 0.0
  %82 = vmatprep.subr.mxu0 0.0
  %83 = vmatpush1.msra.mxu0 0.0
  %84 = vmatprep.subr.mxu0 0.0
  %85 = vmatpush1.msra.mxu0 0.0
  %86 = vmatprep.subr.mxu0 0.0
  %87 = vmatpush1.msra.mxu0 0.0
  %88 = vmatprep.subr.mxu0 0.0
  %89 = vmatpush1.msra.mxu0 0.0
  %90 = vmatprep.subr.mxu0 0.0
  %91 = vmatpush1.msra.mxu0 0.0
  %92 = vmatprep.subr.mxu0 0.0
  %93 = vmatpush1.msra.mxu0 0.0
  %94 = vmatprep.subr.mxu0 0.0
  %95 = vmatpush1.msra.mxu0 0.0
  %96 = vmatprep.subr.mxu0 0.0
  %97 = vmatpush1.msra.mxu0 0.0
  %98 = vmatprep.subr.mxu0 0.0
  %99 = vmatpush1.msra.mxu0 0.0
  %100 = vmatprep.subr.mxu0 0.0
  %101 = vmatpush1.msra.mxu0 0.0
  %102 = vmatprep.subr.mxu0 0.0
  %103 = vmatpush1.msra.mxu0 0.0
  %104 = vmatprep.subr.mxu0 0.0
  %105 = vmatpush1.msra.mxu0 0.0
  %106 = vmatprep.subr.mxu0 0.0
  %107 = vmatpush1.msra.mxu0 0.0
  %108 = vmatprep.subr.mxu0 0.0
  %109 = vmatpush1.msra.mxu0 0.0
  %110 = vmatprep.subr.mxu0 0.0
  %111 = vmatpush1.msra.mxu0 0.0
  %112 = vmatprep.subr.mxu0 0.0
  %113 = vmatpush1.msra.mxu0 0.0
  %114 = vmatprep.subr.mxu0 0.0
  %115 = vmatpush1.msra.mxu0 0.0
  %116 = vmatprep.mubr.f32.mxu0 0.0
  %117 = vmatmul.mubr.f32.gmra.mrb[0].mxu0 %v50
  %v118 = vpop.f32.mrb[0].mxu0
  %v119 = vadd.f32 %v46, %v118
  %v120 = vpop.f32.mrb[0].mxu0
  %121 = vdwg.mxu0
  %v122 = vtanh.pop %v119
  %v123 = vld [vmem:[%s4] sm:$0xff]
  %v124 = vld [vmem:[%s4 + $0x8] sm:$0xff]
  %v125 = vld [vmem:[%s4 + $0x10] sm:$0xff]
  %v126 = vld [vmem:[%s4 + $0x18] sm:$0xff]
  %v127 = vld [vmem:[%s4 + $0x20] sm:$0xff]
  %v128 = vld [vmem:[%s4 + $0x28] sm:$0xff]
  %v129 = vld [vmem:[%s4 + $0x30] sm:$0xff]
  %v130 = vld [vmem:[%s4 + $0x38] sm:$0xff]
  %v131 = vld [vmem:[%s4 + $0x40] sm:$0xff]
  %v132 = vld [vmem:[%s4 + $0x48] sm:$0xff]
  %v133 = vld [vmem:[%s4 + $0x50] sm:$0xff]
  %v134 = vld [vmem:[%s4 + $0x58] sm:$0xff]
  %v135 = vld [vmem:[%s4 + $0x60] sm:$0xff]
  %v136 = vld [vmem:[%s4 + $0x68] sm:$0xff]
  %v137 = vld [vmem:[%s4 + $0x70] sm:$0xff]
  %v138 = vld [vmem:[%s4 + $0x78] sm:$0xff]
  %v139 = vld [vmem:[%s5] sm:$0x1]
  %v141 = vlaneseq
  %v142 = vshrl.u32 %v141, 7
  %v143 = vsub.s32 0, %v142
  %v144 = vrot.slane %v139, %v143
  %146 = vmatprep.subr.mxu0 0.0
  %147 = vmatpush1.msra.mxu0 %v123
  %148 = vmatprep.subr.mxu0 0.0
  %149 = vmatpush1.msra.mxu0 %v124
  %150 = vmatprep.subr.mxu0 0.0
  %151 = vmatpush1.msra.mxu0 %v125
  %152 = vmatprep.subr.mxu0 0.0
  %153 = vmatpush1.msra.mxu0 %v126
  %154 = vmatprep.subr.mxu0 0.0
  %155 = vmatpush1.msra.mxu0 %v127
  %156 = vmatprep.subr.mxu0 0.0
  %157 = vmatpush1.msra.mxu0 %v128
  %158 = vmatprep.subr.mxu0 0.0
  %159 = vmatpush1.msra.mxu0 %v129
  %160 = vmatprep.subr.mxu0 0.0
  %161 = vmatpush1.msra.mxu0 %v130
  %162 = vmatprep.subr.mxu0 0.0
  %163 = vmatpush1.msra.mxu0 %v131
  %164 = vmatprep.subr.mxu0 0.0
  %165 = vmatpush1.msra.mxu0 %v132
  %166 = vmatprep.subr.mxu0 0.0
  %167 = vmatpush1.msra.mxu0 %v133
  %168 = vmatprep.subr.mxu0 0.0
  %169 = vmatpush1.msra.mxu0 %v134
  %170 = vmatprep.subr.mxu0 0.0
  %171 = vmatpush1.msra.mxu0 %v135
  %172 = vmatprep.subr.mxu0 0.0
  %173 = vmatpush1.msra.mxu0 %v136
  %174 = vmatprep.subr.mxu0 0.0
  %175 = vmatpush1.msra.mxu0 %v137
  %176 = vmatprep.subr.mxu0 0.0
  %177 = vmatpush1.msra.mxu0 %v138
  %178 = vmatprep.subr.mxu0 0.0
  %179 = vmatpush1.msra.mxu0 0.0
  %180 = vmatprep.subr.mxu0 0.0
  %181 = vmatpush1.msra.mxu0 0.0
  %182 = vmatprep.subr.mxu0 0.0
  %183 = vmatpush1.msra.mxu0 0.0
  %184 = vmatprep.subr.mxu0 0.0
  %185 = vmatpush1.msra.mxu0 0.0
  %186 = vmatprep.subr.mxu0 0.0
  %187 = vmatpush1.msra.mxu0 0.0
  %188 = vmatprep.subr.mxu0 0.0
  %189 = vmatpush1.msra.mxu0 0.0
  %190 = vmatprep.subr.mxu0 0.0
  %191 = vmatpush1.msra.mxu0 0.0
  %192 = vmatprep.subr.mxu0 0.0
  %193 = vmatpush1.msra.mxu0 0.0
  %194 = vmatprep.subr.mxu0 0.0
  %195 = vmatpush1.msra.mxu0 0.0
  %196 = vmatprep.subr.mxu0 0.0
  %197 = vmatpush1.msra.mxu0 0.0
  %198 = vmatprep.subr.mxu0 0.0
  %199 = vmatpush1.msra.mxu0 0.0
  %200 = vmatprep.subr.mxu0 0.0
  %201 = vmatpush1.msra.mxu0 0.0
  %202 = vmatprep.subr.mxu0 0.0
  %203 = vmatpush1.msra.mxu0 0.0
  %204 = vmatprep.subr.mxu0 0.0
  %205 = vmatpush1.msra.mxu0 0.0
  %206 = vmatprep.subr.mxu0 0.0
  %207 = vmatpush1.msra.mxu0 0.0
  %208 = vmatprep.subr.mxu0 0.0
  %209 = vmatpush1.msra.mxu0 0.0
  %210 = vmatprep.mubr.f32.mxu0 0.0
  %211 = vmatmul.mubr.f32.gmra.mrb[0].mxu0 %v122
  %v212 = vpop.f32.mrb[0].mxu0
  %v213 = vadd.f32 %v144, %v212
  %v214 = vpop.f32.mrb[0].mxu0
  %215 = vdwg.mxu0
  %v216 = vtanh.pop %v213
  %v217 = vld [vmem:[%s6] sm:$0xff]
  %v218 = vld [vmem:[%s6 + $0x8] sm:$0xff]
  %v219 = vld [vmem:[%s6 + $0x10] sm:$0xff]
  %v220 = vld [vmem:[%s6 + $0x18] sm:$0xff]
  %v221 = vld [vmem:[%s6 + $0x20] sm:$0xff]
  %v222 = vld [vmem:[%s6 + $0x28] sm:$0xff]
  %v223 = vld [vmem:[%s6 + $0x30] sm:$0xff]
  %v224 = vld [vmem:[%s6 + $0x38] sm:$0xff]
  %v225 = vld [vmem:[%s7] sm:$0x1]
  %v227 = vlaneseq
  %v228 = vshrl.u32 %v227, 7
  %v229 = vsub.s32 0, %v228
  %v230 = vrot.slane %v225, %v229
  %vm232 = vcmask 523264
  %v234 = vsel %vm232, %v216, 0
  %236 = vmatprep.subr.mxu0 0.0
  %237 = vmatpush1.msra.mxu0 %v217
  %238 = vmatprep.subr.mxu0 0.0
  %239 = vmatpush1.msra.mxu0 %v218
  %240 = vmatprep.subr.mxu0 0.0
  %241 = vmatpush1.msra.mxu0 %v219
  %242 = vmatprep.subr.mxu0 0.0
  %243 = vmatpush1.msra.mxu0 %v220
  %244 = vmatprep.subr.mxu0 0.0
  %245 = vmatpush1.msra.mxu0 %v221
  %246 = vmatprep.subr.mxu0 0.0
  %247 = vmatpush1.msra.mxu0 %v222
  %248 = vmatprep.subr.mxu0 0.0
  %249 = vmatpush1.msra.mxu0 %v223
  %250 = vmatprep.subr.mxu0 0.0
  %251 = vmatpush1.msra.mxu0 %v224
  %252 = vmatprep.subr.mxu0 0.0
  %253 = vmatpush1.msra.mxu0 0.0
  %254 = vmatprep.subr.mxu0 0.0
  %255 = vmatpush1.msra.mxu0 0.0
  %256 = vmatprep.subr.mxu0 0.0
  %257 = vmatpush1.msra.mxu0 0.0
  %258 = vmatprep.subr.mxu0 0.0
  %259 = vmatpush1.msra.mxu0 0.0
  %260 = vmatprep.subr.mxu0 0.0
  %261 = vmatpush1.msra.mxu0 0.0
  %262 = vmatprep.subr.mxu0 0.0
  %263 = vmatpush1.msra.mxu0 0.0
  %264 = vmatprep.subr.mxu0 0.0
  %265 = vmatpush1.msra.mxu0 0.0
  %266 = vmatprep.subr.mxu0 0.0
  %267 = vmatpush1.msra.mxu0 0.0
  %268 = vmatprep.subr.mxu0 0.0
  %269 = vmatpush1.msra.mxu0 0.0
  %270 = vmatprep.subr.mxu0 0.0
  %271 = vmatpush1.msra.mxu0 0.0
  %272 = vmatprep.subr.mxu0 0.0
  %273 = vmatpush1.msra.mxu0 0.0
  %274 = vmatprep.subr.mxu0 0.0
  %275 = vmatpush1.msra.mxu0 0.0
  %276 = vmatprep.subr.mxu0 0.0
  %277 = vmatpush1.msra.mxu0 0.0
  %278 = vmatprep.subr.mxu0 0.0
  %279 = vmatpush1.msra.mxu0 0.0
  %280 = vmatprep.subr.mxu0 0.0
  %281 = vmatpush1.msra.mxu0 0.0
  %282 = vmatprep.subr.mxu0 0.0
  %283 = vmatpush1.msra.mxu0 0.0
  %284 = vmatprep.subr.mxu0 0.0
  %285 = vmatpush1.msra.mxu0 0.0
  %286 = vmatprep.subr.mxu0 0.0
  %287 = vmatpush1.msra.mxu0 0.0
  %288 = vmatprep.subr.mxu0 0.0
  %289 = vmatpush1.msra.mxu0 0.0
  %290 = vmatprep.subr.mxu0 0.0
  %291 = vmatpush1.msra.mxu0 0.0
  %292 = vmatprep.subr.mxu0 0.0
  %293 = vmatpush1.msra.mxu0 0.0
  %294 = vmatprep.subr.mxu0 0.0
  %295 = vmatpush1.msra.mxu0 0.0
  %296 = vmatprep.subr.mxu0 0.0
  %297 = vmatpush1.msra.mxu0 0.0
  %298 = vmatprep.subr.mxu0 0.0
  %299 = vmatpush1.msra.mxu0 0.0
  %300 = vmatprep.mubr.f32.mxu0 0.0
  %301 = vmatmul.mubr.f32.gmra.mrb[0].mxu0 %v234
  %v302 = vpop.f32.mrb[0].mxu0
  %v303 = vadd.f32 %v230, %v302
  %v304 = vpop.f32.mrb[0].mxu0
  %305 = vdwg.mxu0
  %v306 = vtanh.pop %v303
  %v307 = vld [vmem:[%s1] sm:$0xff]
  %v308 = vsub.f32 %v307, %v306
  %v309 = vmul.f32 %v308, %v308
  %v310 = vld [vmem:[%s8] sm:$0x1]
  %v312 = vlaneseq
  %v313 = vshrl.u32 %v312, 7
  %v314 = vsub.s32 0, %v313
  %v315 = vrot.slane %v310, %v314
  %v317 = vmul.f32 %v309, %v315
  %vm318 = vcmask 31744
  %v319 = vsel %vm318, %v317, 0.0
  %320 = vadd.xlane.f32.xlu0 %v319
  %v321 = vpop.xlane.xlu0 %320
  %v322 = vstv %s36
  %v323 = vadd.f32 %v321, %v322
  %v324 = vlaneseq
  %v325 = vand.u32 %v324, 127
  %vm326 = vcmp.eq.s32.totalorder %v325, 4
  %vm327 = vcmp.eq.s32.totalorder %v325, 5
  %v328 = vsel %vm327, %v323, 0.0
  %v329 = vsel %vm326, %v303, %v328
  %vm330 = vcmask 64512
  %331 = vst.msk [vmem:[%s10] sm:$0xff] %vm330, %v329
  // Predicated region
  $region42: #{a2c_evaluate.1} parent=0 // pred_check
    _
  $region43: #{a2c_evaluate.1} parent=0 // pred_check_branch
    %333 = sbr.rel (0) target = $region45
  $region44: #{a2c_evaluate.1} parent=0 // pred_region
    _
  $region45: #{a2c_evaluate.1} parent=0 // pred_fallthru
    _
  // Predicated region
  $region46: #{a2c_evaluate.1} parent=0 // pred_check
    _
  $region47: #{a2c_evaluate.1} parent=0 // pred_check_branch
    %335 = sbr.rel (0) target = $region49
  $region48: #{a2c_evaluate.1} parent=0 // pred_region
    _
  $region49: #{a2c_evaluate.1} parent=0 // pred_fallthru
    _

</llo_original>
